<compile_context>
chip_gen: v6e
topology: v6e:2x2x1
jax: 0.10.0
libtpu: 0.0.40
codegen_flags: <defaults>
</compile_context>

<pallas_src>
import functools

import jax
import jax.numpy as jnp
from jax.experimental import pallas as pl
from jax.experimental.pallas import tpu as pltpu

MONTH_VOCAB = 13
DAY_VOCAB = 32
WEEKDAY_VOCAB = 7
FUSED_VOCAB = MONTH_VOCAB + DAY_VOCAB + WEEKDAY_VOCAB  # 52
# x[..., 0]=month (+0), x[..., 1]=day (+13), x[..., 2]=weekday (+45) in the fused table.
_FIELD_OFFSET = (0, MONTH_VOCAB, MONTH_VOCAB + DAY_VOCAB)


def temporal_embed_kernel(idx_ref, tbl_ref, out_ref, *, col_offsets):
    """One grid step.

    idx_ref: (tile_rows, 3*pack) int32 -- raw [month, day, weekday] per packed token.
    tbl_ref: (pack*52, pack*d_model)   -- block-diagonal fused table (VMEM-resident).
    out_ref: (tile_rows, pack*d_model) -- lane-dense output tile.
    col_offsets: static per-column offsets into the block-diagonal fused vocab
        (field offset + 52 * packed-token slot), folded in-kernel so the wrapper
        never writes an offset copy of the index array back to HBM.
    """
    idx = idx_ref[...]
    rows, ncols = idx.shape

    # Build the (1, ncols) constant offset row from a tiny column iota +
    # compare/select chain (ncols <= 12 -> ~2 dozen single-vreg VPU ops), then
    # add it to the whole index block in ONE vectorized add.
    col = jax.lax.broadcasted_iota(jnp.int32, (1, ncols), 1)
    off = jnp.zeros((1, ncols), jnp.int32)
    for c, o in enumerate(col_offsets):
        if o:
            off = jnp.where(col == c, jnp.int32(o), off)
    idx = idx + off

    k = tbl_ref.shape[0]  # pack * 52
    # Lane-dim iota regenerated per step (cheap native pattern).  Deliberately
    # NOT hoisted into scratch initialized under pl.when(program_id==0): with
    # dimension_semantics=("parallel",) the second TensorCore on v7x never runs
    # program 0 and would read uninitialized scratch.
    lane = jax.lax.broadcasted_iota(jnp.int32, (rows, k), 1)

    # Each packed token's 3 indices land in disjoint sub-ranges of its own
    # 52-wide segment, so OR-ing the per-column compares builds the combined
    # one-hot with a single mask->f32 convert feeding the MXU.
    hit = idx[:, 0:1] == lane
    for c in range(1, ncols):
        hit = jnp.logical_or(hit, idx[:, c:c + 1] == lane)
    onehot = hit.astype(tbl_ref.dtype)

    acc = jnp.dot(onehot, tbl_ref[...], preferred_element_type=jnp.float32)
    out_ref[...] = acc.astype(out_ref.dtype)


def temporal_embedding(x, month_tbl, day_tbl, weekday_tbl, *,
                       tile_tokens=8192, min_pallas_tokens=4096,
                       force_pallas=False):
    """x: (B, L, 3) int array [month, day, weekday]; returns (B, L, d_model)."""
    B, L, C = x.shape
    assert C >= 3
    d_model = month_tbl.shape[1]
    out_dtype = month_tbl.dtype
    N = B * L

    # Small-N fallback: the fixed pallas_call cost dominates tiny inputs; XLA's
    # fused gather+add is faster and simpler there.
    if N < min_pallas_tokens and not force_pallas:
        return (jnp.take(weekday_tbl, x[..., 2].astype(jnp.int32), axis=0)
                + jnp.take(day_tbl, x[..., 1].astype(jnp.int32), axis=0)
                + jnp.take(month_tbl, x[..., 0].astype(jnp.int32), axis=0))

    # ---- fuse the three tiny tables once (wrapper-side, not per grid step) ----
    fused = jnp.concatenate([month_tbl, day_tbl, weekday_tbl], axis=0)  # (52, d)

    # Lane-dense packing factor for the output's last dim.  Capped at 4: at
    # d_model=32 that already gives 128-lane unmasked stores; wider packing only
    # grows the compare width (pure VALU cost) and the kron table.
    if d_model < 128 and 128 % d_model == 0:
        pack = min(128 // d_model, 4)
    else:
        pack = 1
    out_lanes = pack * d_model

    if pack == 1:
        tbl = fused
    else:
        # Block-diagonal replication: packed token t reads rows [t*52, (t+1)*52)
        # and writes lanes [t*d_model, (t+1)*d_model).
        tbl = jnp.kron(jnp.eye(pack, dtype=fused.dtype), fused)  # (pack*52, pack*d)

    # ---- raw indices only; constant offsets are folded inside the kernel ----
    idx = x[..., :3].reshape(N, 3).astype(jnp.int32)

    rows_needed = pl.cdiv(N, pack)
    rows8 = ((rows_needed + 7) // 8) * 8
    tile_rows = max(8, tile_tokens // pack)
    tile_rows = ((tile_rows + 7) // 8) * 8              # multiple of 8
    tile_rows = min(tile_rows, rows8)                   # don't over-pad tiny inputs
    n_tiles = pl.cdiv(rows_needed, tile_rows)
    # Prefer an even tile count (>=2) so v7x's two TensorCores both get work
    # under dimension_semantics=("parallel",).  No-op on single-TC v5e/v6e.
    if n_tiles % 2 == 1 and rows8 >= 16:
        target = n_tiles + 1
        tile_rows = max(8, ((pl.cdiv(rows_needed, target) + 7) // 8) * 8)
        n_tiles = pl.cdiv(rows_needed, tile_rows)

    rows_p = n_tiles * tile_rows
    Np = rows_p * pack
    if Np != N:
        # Padded tokens point at fused row 0; their rows are sliced off below.
        idx = jnp.pad(idx, ((0, Np - N), (0, 0)))
    idx = idx.reshape(rows_p, 3 * pack)

    col_offsets = tuple(_FIELD_OFFSET[c % 3] + (c // 3) * FUSED_VOCAB
                        for c in range(3 * pack))
    kernel = functools.partial(temporal_embed_kernel, col_offsets=col_offsets)

    out = pl.pallas_call(
        kernel,
        out_shape=jax.ShapeDtypeStruct((rows_p, out_lanes), out_dtype),
        grid=(n_tiles,),
        in_specs=[
            pl.BlockSpec((tile_rows, 3 * pack), lambda i: (i, 0)),
            # Constant index_map -> DMA'd once, stays VMEM-resident (2x104 KiB
            # pipeline buffers are negligible at this table size).
            pl.BlockSpec(tbl.shape, lambda i: (0, 0)),
        ],
        out_specs=pl.BlockSpec((tile_rows, out_lanes), lambda i: (i, 0)),
        compiler_params=pltpu.CompilerParams(
            dimension_semantics=("parallel",),            # shards tiles across v7x TCs
            vmem_limit_bytes=32 * 1024 * 1024,            # conservative for v7x (64 MiB/TC)
        ),
    )(idx, tbl)

    # (rows_p, pack*d_model) row-major is bit-identical in HBM to (Np, d_model):
    # the reshape below is free.
    return out.reshape(Np, d_model)[:N].reshape(B, L, d_model)


if __name__ == "__main__":
    key = jax.random.PRNGKey(0)
    k_w, k_d, k_m, k_x = jax.random.split(key, 4)

    d_model = 32
    # Deterministic parameter init (nn.Embedding default: N(0, 1)), float32.
    weekday_tbl = jax.random.normal(k_w, (WEEKDAY_VOCAB, d_model), jnp.float32)
    day_tbl = jax.random.normal(k_d, (DAY_VOCAB, d_model), jnp.float32)
    month_tbl = jax.random.normal(k_m, (MONTH_VOCAB, d_model), jnp.float32)

    def reference(x):
        # Pure-JAX mirror of the PyTorch forward.
        return (jnp.take(weekday_tbl, x[..., 2], axis=0)
                + jnp.take(day_tbl, x[..., 1], axis=0)
                + jnp.take(month_tbl, x[..., 0], axis=0))

    def make_x(k, B, L):
        km, kd, kw = jax.random.split(k, 3)
        month = jax.random.randint(km, (B, L), 0, MONTH_VOCAB, jnp.int32)
        day = jax.random.randint(kd, (B, L), 0, DAY_VOCAB, jnp.int32)
        weekday = jax.random.randint(kw, (B, L), 0, WEEKDAY_VOCAB, jnp.int32)
        return jnp.stack([month, day, weekday], axis=-1)  # (B, L, 3)

    # Small-shape check, forced through the Pallas kernel (B=2, L=8, d_model=32).
    x_small = make_x(jax.random.fold_in(k_x, 0), 2, 8)
    out_small = jax.block_until_ready(
        temporal_embedding(x_small, month_tbl, day_tbl, weekday_tbl,
                           force_pallas=True))
    assert out_small.shape == (2, 8, d_model) and out_small.dtype == jnp.float32
    assert jnp.allclose(out_small, reference(x_small), atol=1e-5, rtol=1e-5)

    # Multi-tile check: exercises the even tile split and cross-tile packing.
    x_big = make_x(jax.random.fold_in(k_x, 1), 2, 1024)
    out_big = jax.block_until_ready(
        temporal_embedding(x_big, month_tbl, day_tbl, weekday_tbl,
                           force_pallas=True))
    assert jnp.allclose(out_big, reference(x_big), atol=1e-5, rtol=1e-5)

    print("KERNEL_OK")
</pallas_src>

<mosaic_0001>
module attributes {stable_mosaic.version = 11 : i64} {
  func.func @temporal_embed_kernel(%arg0: i32, %arg1: memref<8x12xi32, #tpu.memory_space<vmem>>, %arg2: memref<208x128xf32, #tpu.memory_space<vmem>>, %arg3: memref<8x128xf32, #tpu.memory_space<vmem>>) attributes {dimension_semantics = [#tpu.dimension_semantics<parallel>], iteration_bounds = array<i64: 1>, scalar_prefetch = 0 : i64, scratch_operands = 0 : i64, tpu.core_type = #tpu.core_type<tc>, window_params = [{transform_indices = @transform_0, window_bounds = array<i64: 8, 12>}, {pipeline_mode = #tpu.pipeline_mode<synchronous>, transform_indices = @transform_1, window_bounds = array<i64: 208, 128>}, {transform_indices = @transform_2, window_bounds = array<i64: 8, 128>}]} {
    %c0 = arith.constant 0 : index
    %c0_0 = arith.constant 0 : index
    %0 = vector.load %arg1[%c0, %c0_0] : memref<8x12xi32, #tpu.memory_space<vmem>>, vector<8x12xi32>
    %1 = tpu.iota {dimensions = array<i32: 1>} : vector<1x12xi32>
    %c0_i32 = arith.constant 0 : i32
    %2 = vector.broadcast %c0_i32 : i32 to vector<1x12xi32>
    %c1_i32 = arith.constant 1 : i32
    %3 = vector.broadcast %c1_i32 : i32 to vector<1x12xi32>
    %4 = arith.cmpi eq, %1, %3 : vector<1x12xi32>
    %c13_i32 = arith.constant 13 : i32
    %5 = vector.broadcast %c13_i32 : i32 to vector<1x12xi32>
    %6 = arith.select %4, %5, %2 : vector<1x12xi1>, vector<1x12xi32>
    %c2_i32 = arith.constant 2 : i32
    %7 = vector.broadcast %c2_i32 : i32 to vector<1x12xi32>
    %8 = arith.cmpi eq, %1, %7 : vector<1x12xi32>
    %c45_i32 = arith.constant 45 : i32
    %9 = vector.broadcast %c45_i32 : i32 to vector<1x12xi32>
    %10 = arith.select %8, %9, %6 : vector<1x12xi1>, vector<1x12xi32>
    %c3_i32 = arith.constant 3 : i32
    %11 = vector.broadcast %c3_i32 : i32 to vector<1x12xi32>
    %12 = arith.cmpi eq, %1, %11 : vector<1x12xi32>
    %c52_i32 = arith.constant 52 : i32
    %13 = vector.broadcast %c52_i32 : i32 to vector<1x12xi32>
    %14 = arith.select %12, %13, %10 : vector<1x12xi1>, vector<1x12xi32>
    %c4_i32 = arith.constant 4 : i32
    %15 = vector.broadcast %c4_i32 : i32 to vector<1x12xi32>
    %16 = arith.cmpi eq, %1, %15 : vector<1x12xi32>
    %c65_i32 = arith.constant 65 : i32
    %17 = vector.broadcast %c65_i32 : i32 to vector<1x12xi32>
    %18 = arith.select %16, %17, %14 : vector<1x12xi1>, vector<1x12xi32>
    %c5_i32 = arith.constant 5 : i32
    %19 = vector.broadcast %c5_i32 : i32 to vector<1x12xi32>
    %20 = arith.cmpi eq, %1, %19 : vector<1x12xi32>
    %c97_i32 = arith.constant 97 : i32
    %21 = vector.broadcast %c97_i32 : i32 to vector<1x12xi32>
    %22 = arith.select %20, %21, %18 : vector<1x12xi1>, vector<1x12xi32>
    %c6_i32 = arith.constant 6 : i32
    %23 = vector.broadcast %c6_i32 : i32 to vector<1x12xi32>
    %24 = arith.cmpi eq, %1, %23 : vector<1x12xi32>
    %c104_i32 = arith.constant 104 : i32
    %25 = vector.broadcast %c104_i32 : i32 to vector<1x12xi32>
    %26 = arith.select %24, %25, %22 : vector<1x12xi1>, vector<1x12xi32>
    %c7_i32 = arith.constant 7 : i32
    %27 = vector.broadcast %c7_i32 : i32 to vector<1x12xi32>
    %28 = arith.cmpi eq, %1, %27 : vector<1x12xi32>
    %c117_i32 = arith.constant 117 : i32
    %29 = vector.broadcast %c117_i32 : i32 to vector<1x12xi32>
    %30 = arith.select %28, %29, %26 : vector<1x12xi1>, vector<1x12xi32>
    %c8_i32 = arith.constant 8 : i32
    %31 = vector.broadcast %c8_i32 : i32 to vector<1x12xi32>
    %32 = arith.cmpi eq, %1, %31 : vector<1x12xi32>
    %c149_i32 = arith.constant 149 : i32
    %33 = vector.broadcast %c149_i32 : i32 to vector<1x12xi32>
    %34 = arith.select %32, %33, %30 : vector<1x12xi1>, vector<1x12xi32>
    %c9_i32 = arith.constant 9 : i32
    %35 = vector.broadcast %c9_i32 : i32 to vector<1x12xi32>
    %36 = arith.cmpi eq, %1, %35 : vector<1x12xi32>
    %c156_i32 = arith.constant 156 : i32
    %37 = vector.broadcast %c156_i32 : i32 to vector<1x12xi32>
    %38 = arith.select %36, %37, %34 : vector<1x12xi1>, vector<1x12xi32>
    %c10_i32 = arith.constant 10 : i32
    %39 = vector.broadcast %c10_i32 : i32 to vector<1x12xi32>
    %40 = arith.cmpi eq, %1, %39 : vector<1x12xi32>
    %c169_i32 = arith.constant 169 : i32
    %41 = vector.broadcast %c169_i32 : i32 to vector<1x12xi32>
    %42 = arith.select %40, %41, %38 : vector<1x12xi1>, vector<1x12xi32>
    %c11_i32 = arith.constant 11 : i32
    %43 = vector.broadcast %c11_i32 : i32 to vector<1x12xi32>
    %44 = arith.cmpi eq, %1, %43 : vector<1x12xi32>
    %c201_i32 = arith.constant 201 : i32
    %45 = vector.broadcast %c201_i32 : i32 to vector<1x12xi32>
    %46 = arith.select %44, %45, %42 : vector<1x12xi1>, vector<1x12xi32>
    %47 = vector.broadcast %46 : vector<1x12xi32> to vector<8x12xi32>
    %48 = arith.addi %0, %47 : vector<8x12xi32>
    %49 = tpu.iota {dimensions = array<i32: 1>} : vector<8x208xi32>
    %50 = vector.extract_strided_slice %48 {offsets = [0, 0], sizes = [8, 1], strides = [1, 1]} : vector<8x12xi32> to vector<8x1xi32>
    %51 = vector.broadcast %50 : vector<8x1xi32> to vector<8x208xi32>
    %52 = arith.cmpi eq, %51, %49 : vector<8x208xi32>
    %53 = vector.extract_strided_slice %48 {offsets = [0, 1], sizes = [8, 1], strides = [1, 1]} : vector<8x12xi32> to vector<8x1xi32>
    %54 = vector.broadcast %53 : vector<8x1xi32> to vector<8x208xi32>
    %55 = arith.cmpi eq, %54, %49 : vector<8x208xi32>
    %56 = arith.ori %52, %55 : vector<8x208xi1>
    %57 = vector.extract_strided_slice %48 {offsets = [0, 2], sizes = [8, 1], strides = [1, 1]} : vector<8x12xi32> to vector<8x1xi32>
    %58 = vector.broadcast %57 : vector<8x1xi32> to vector<8x208xi32>
    %59 = arith.cmpi eq, %58, %49 : vector<8x208xi32>
    %60 = arith.ori %56, %59 : vector<8x208xi1>
    %61 = vector.extract_strided_slice %48 {offsets = [0, 3], sizes = [8, 1], strides = [1, 1]} : vector<8x12xi32> to vector<8x1xi32>
    %62 = vector.broadcast %61 : vector<8x1xi32> to vector<8x208xi32>
    %63 = arith.cmpi eq, %62, %49 : vector<8x208xi32>
    %64 = arith.ori %60, %63 : vector<8x208xi1>
    %65 = vector.extract_strided_slice %48 {offsets = [0, 4], sizes = [8, 1], strides = [1, 1]} : vector<8x12xi32> to vector<8x1xi32>
    %66 = vector.broadcast %65 : vector<8x1xi32> to vector<8x208xi32>
    %67 = arith.cmpi eq, %66, %49 : vector<8x208xi32>
    %68 = arith.ori %64, %67 : vector<8x208xi1>
    %69 = vector.extract_strided_slice %48 {offsets = [0, 5], sizes = [8, 1], strides = [1, 1]} : vector<8x12xi32> to vector<8x1xi32>
    %70 = vector.broadcast %69 : vector<8x1xi32> to vector<8x208xi32>
    %71 = arith.cmpi eq, %70, %49 : vector<8x208xi32>
    %72 = arith.ori %68, %71 : vector<8x208xi1>
    %73 = vector.extract_strided_slice %48 {offsets = [0, 6], sizes = [8, 1], strides = [1, 1]} : vector<8x12xi32> to vector<8x1xi32>
    %74 = vector.broadcast %73 : vector<8x1xi32> to vector<8x208xi32>
    %75 = arith.cmpi eq, %74, %49 : vector<8x208xi32>
    %76 = arith.ori %72, %75 : vector<8x208xi1>
    %77 = vector.extract_strided_slice %48 {offsets = [0, 7], sizes = [8, 1], strides = [1, 1]} : vector<8x12xi32> to vector<8x1xi32>
    %78 = vector.broadcast %77 : vector<8x1xi32> to vector<8x208xi32>
    %79 = arith.cmpi eq, %78, %49 : vector<8x208xi32>
    %80 = arith.ori %76, %79 : vector<8x208xi1>
    %81 = vector.extract_strided_slice %48 {offsets = [0, 8], sizes = [8, 1], strides = [1, 1]} : vector<8x12xi32> to vector<8x1xi32>
    %82 = vector.broadcast %81 : vector<8x1xi32> to vector<8x208xi32>
    %83 = arith.cmpi eq, %82, %49 : vector<8x208xi32>
    %84 = arith.ori %80, %83 : vector<8x208xi1>
    %85 = vector.extract_strided_slice %48 {offsets = [0, 9], sizes = [8, 1], strides = [1, 1]} : vector<8x12xi32> to vector<8x1xi32>
    %86 = vector.broadcast %85 : vector<8x1xi32> to vector<8x208xi32>
    %87 = arith.cmpi eq, %86, %49 : vector<8x208xi32>
    %88 = arith.ori %84, %87 : vector<8x208xi1>
    %89 = vector.extract_strided_slice %48 {offsets = [0, 10], sizes = [8, 1], strides = [1, 1]} : vector<8x12xi32> to vector<8x1xi32>
    %90 = vector.broadcast %89 : vector<8x1xi32> to vector<8x208xi32>
    %91 = arith.cmpi eq, %90, %49 : vector<8x208xi32>
    %92 = arith.ori %88, %91 : vector<8x208xi1>
    %93 = vector.extract_strided_slice %48 {offsets = [0, 11], sizes = [8, 1], strides = [1, 1]} : vector<8x12xi32> to vector<8x1xi32>
    %94 = vector.broadcast %93 : vector<8x1xi32> to vector<8x208xi32>
    %95 = arith.cmpi eq, %94, %49 : vector<8x208xi32>
    %96 = arith.ori %92, %95 : vector<8x208xi1>
    %97 = arith.extui %96 : vector<8x208xi1> to vector<8x208xi32>
    %98 = arith.sitofp %97 : vector<8x208xi32> to vector<8x208xf32>
    %c0_1 = arith.constant 0 : index
    %c0_2 = arith.constant 0 : index
    %99 = vector.load %arg2[%c0_1, %c0_2] : memref<208x128xf32, #tpu.memory_space<vmem>>, vector<208x128xf32>
    %cst = arith.constant dense<0.000000e+00> : vector<8x128xf32>
    %100 = tpu.matmul %98, %99, %cst {dimension_numbers = #tpu.dot_dimension_numbers<[1], [0], [0], [1], [0, 0, 1, 1], [], []>} : vector<8x208xf32>, vector<208x128xf32>, vector<8x128xf32> -> vector<8x128xf32>
    %c0_3 = arith.constant 0 : index
    %c0_4 = arith.constant 0 : index
    %101 = vector.load %arg3[%c0_3, %c0_4] : memref<8x128xf32, #tpu.memory_space<vmem>>, vector<8x128xf32>
    tpu.vector_store %arg3[%c0_3, %c0_4], %100 {strides = array<i32>} : memref<8x128xf32, #tpu.memory_space<vmem>>, vector<8x128xf32>,
    return
  }
  func.func @transform_0(%arg0: i32) -> (i32, i32) {
    %c0_i32 = arith.constant 0 : i32
    %c0_i32_0 = arith.constant 0 : i32
    return %arg0, %c0_i32 : i32, i32
  }
  func.func @transform_1(%arg0: i32) -> (i32, i32) {
    %c0_i32 = arith.constant 0 : i32
    %c0_i32_0 = arith.constant 0 : i32
    %c0_i32_1 = arith.constant 0 : i32
    return %c0_i32, %c0_i32_0 : i32, i32
  }
  func.func @transform_2(%arg0: i32) -> (i32, i32) {
    %c0_i32 = arith.constant 0 : i32
    %c0_i32_0 = arith.constant 0 : i32
    return %arg0, %c0_i32 : i32, i32
  }
}

</mosaic_0001>

<llo_original>
// kernel: tpu_custom_call.1
$region0: #{tpu_custom_call.1}
  #allocation0 [shape = 'u32[]', space=smem, size = 0x4, offset = 0x4, fixed_abs, tag = 'smem constant byte address 0x4 - core index']
  #allocation1 [shape = 'u32[144,128]{1,0:T(1,128)}', space=vmem, size = 0x12000, scoped, tag = 'internal scratch']
  %s0 = inlined_call_operand.hbm [shape: s32[8,12], index: 0, kind: input, shape index: {}]
  %s1 = inlined_call_operand.hbm [shape: f32[208,128], index: 1, kind: input, shape index: {}]
  %s2 = inlined_call_operand.hbm [shape: f32[8,128], index: 2, kind: output, shape index: {}]
  %s3 = sld [smem:[#allocation0]]
  $region26: #{tpu_custom_call.1} parent=0
    _
  %s5 = ssub.s32 1, %s3
  %s6 = scalar_select 0, %s5, %s3
  $region1: #{tpu_custom_call.1} parent=0
    #allocation2 [shape = 'u8[4096]{0}', space=vmem, size = 0x1000, scoped, tag = 'input window, operand 0, single buffered']
    #allocation3 [shape = 's32[1]{0}', space=sflag, size = 0x4, scoped, tag = 'scoped memory for tpu_custom_call.1']
    #allocation4 [shape = 's32[1]{0}', space=sflag, size = 0x4, scoped, tag = 'scoped memory for tpu_custom_call.1']
    #allocation5 [shape = 'u8[106496]{0}', space=vmem, size = 0x1a000, scoped, tag = 'input window, operand 1, single buffered']
    #allocation6 [shape = 's32[1]{0}', space=sflag, size = 0x4, scoped, tag = 'scoped memory for tpu_custom_call.1']
    #allocation7 [shape = 'u8[4096]{0}', space=vmem, size = 0x1000, scoped, tag = 'output window, operand 0, single buffered']
    %7 = vsyncpa [#allocation3], 0
    %8 = vsyncpa [#allocation6], 0
    %9 = vsyncpa [#allocation4], 0
    // Predicated region
    $region2: #{tpu_custom_call.1} parent=1 // pred_check
      _
    $region3: #{tpu_custom_call.1} parent=1 // pred_check_branch
      %11 = sbr.rel (0) target = $region5
    $region4: #{tpu_custom_call.1} parent=1 // pred_region
      %s13 = ssub.s32 128, 128
      %14 = vsyncadd [#allocation3], %s13
      %s16 = sshll.u32 [#allocation2], 4
      %s17 = int_to_ptr.vmem [resolvable:$true] %s16
      %19 = dma.hbm_to_vmem [thread:$0]  %s0, 128, %s17, [#allocation3]
    $region5: #{tpu_custom_call.1} parent=1 // pred_fallthru
      _
    // Predicated region
    $region6: #{tpu_custom_call.1} parent=1 // pred_check
      _
    $region7: #{tpu_custom_call.1} parent=1 // pred_check_branch
      %21 = sbr.rel (0) target = $region9
    $region8: #{tpu_custom_call.1} parent=1 // pred_region
      %s23 = ssub.s32 3328, 3328
      %24 = vsyncadd [#allocation6], %s23
      %s25 = sshll.u32 [#allocation5], 4
      %s26 = int_to_ptr.vmem [resolvable:$true] %s25
      %31 = dma.hbm_to_vmem [thread:$0]  %s1, 3328, %s26, [#allocation6], 128, 128, 8
    $region9: #{tpu_custom_call.1} parent=1 // pred_fallthru
      _
    // Predicated region
    $region10: #{tpu_custom_call.1} parent=1 // pred_check
      _
    $region11: #{tpu_custom_call.1} parent=1 // pred_check_branch
      %33 = sbr.rel (0) target = $region13
    $region12: #{tpu_custom_call.1} parent=1 // pred_region
      %34 = dma.done [#allocation3], 128
    $region13: #{tpu_custom_call.1} parent=1 // pred_fallthru
      _
    // Predicated region
    $region14: #{tpu_custom_call.1} parent=1 // pred_check
      _
    $region15: #{tpu_custom_call.1} parent=1 // pred_check_branch
      %36 = sbr.rel (0) target = $region17
    $region16: #{tpu_custom_call.1} parent=1 // pred_region
      %37 = dma.done [#allocation6], 3328
    $region17: #{tpu_custom_call.1} parent=1 // pred_fallthru
      _
    %v38 = vld [vmem:[#allocation2] sm:$0xff]
    %v39 = vlaneseq
    %v40 = vand.u32 %v39, 127
    %vm41 = vcmp.eq.s32.totalorder %v40, 1
    %v42 = vsel %vm41, 13, 0
    %vm43 = vcmp.eq.s32.totalorder %v40, 2
    %v44 = vsel %vm43, 45, %v42
    %vm45 = vcmp.eq.s32.totalorder %v40, 3
    %v46 = vsel %vm45, 52, %v44
    %vm47 = vcmp.eq.s32.totalorder %v40, 4
    %v48 = vsel %vm47, 65, %v46
    %vm49 = vcmp.eq.s32.totalorder %v40, 5
    %v50 = vsel %vm49, 97, %v48
    %vm51 = vcmp.eq.s32.totalorder %v40, 6
    %v52 = vsel %vm51, 104, %v50
    %vm53 = vcmp.eq.s32.totalorder %v40, 7
    %v54 = vsel %vm53, 117, %v52
    %vm55 = vcmp.eq.s32.totalorder %v40, 8
    %v56 = vsel %vm55, 149, %v54
    %vm57 = vcmp.eq.s32.totalorder %v40, 9
    %v58 = vsel %vm57, 156, %v56
    %vm59 = vcmp.eq.s32.totalorder %v40, 10
    %v60 = vsel %vm59, 169, %v58
    %vm61 = vcmp.eq.s32.totalorder %v40, 11
    %v62 = vsel %vm61, 201, %v60
    %v63 = vadd.s32 %v38, %v62
    %v64 = vadd.s32 %v40, 128
    %65 = vset.pattern.permute.xlu0 0
    %66 = vperm.xlu0 %65, %v63
    %v67 = vpop.permute.xlu0 %66
    %vm68 = vcmp.eq.s32.totalorder %v67, %v40
    %vm69 = vcmp.eq.s32.totalorder %v67, %v64
    %70 = vset.pattern.permute.xlu0 1
    %71 = vperm.xlu0 %70, %v63
    %v72 = vpop.permute.xlu0 %71
    %vm73 = vcmp.eq.s32.totalorder %v72, %v40
    %vm74 = vcmp.eq.s32.totalorder %v72, %v64
    %vm75 = vmor %vm68, %vm73
    %vm76 = vmor %vm69, %vm74
    %77 = vset.pattern.permute.xlu0 2
    %78 = vperm.xlu0 %77, %v63
    %v79 = vpop.permute.xlu0 %78
    %vm80 = vcmp.eq.s32.totalorder %v79, %v40
    %vm81 = vcmp.eq.s32.totalorder %v79, %v64
    %vm82 = vmor %vm75, %vm80
    %vm83 = vmor %vm76, %vm81
    %84 = vset.pattern.permute.xlu0 3
    %85 = vperm.xlu0 %84, %v63
    %v86 = vpop.permute.xlu0 %85
    %vm87 = vcmp.eq.s32.totalorder %v86, %v40
    %vm88 = vcmp.eq.s32.totalorder %v86, %v64
    %vm89 = vmor %vm82, %vm87
    %vm90 = vmor %vm83, %vm88
    %91 = vset.pattern.permute.xlu0 4
    %92 = vperm.xlu0 %91, %v63
    %v93 = vpop.permute.xlu0 %92
    %vm94 = vcmp.eq.s32.totalorder %v93, %v40
    %vm95 = vcmp.eq.s32.totalorder %v93, %v64
    %vm96 = vmor %vm89, %vm94
    %vm97 = vmor %vm90, %vm95
    %98 = vset.pattern.permute.xlu0 5
    %99 = vperm.xlu0 %98, %v63
    %v100 = vpop.permute.xlu0 %99
    %vm101 = vcmp.eq.s32.totalorder %v100, %v40
    %vm102 = vcmp.eq.s32.totalorder %v100, %v64
    %vm103 = vmor %vm96, %vm101
    %vm104 = vmor %vm97, %vm102
    %105 = vset.pattern.permute.xlu0 6
    %106 = vperm.xlu0 %105, %v63
    %v107 = vpop.permute.xlu0 %106
    %vm108 = vcmp.eq.s32.totalorder %v107, %v40
    %vm109 = vcmp.eq.s32.totalorder %v107, %v64
    %vm110 = vmor %vm103, %vm108
    %vm111 = vmor %vm104, %vm109
    %112 = vset.pattern.permute.xlu0 7
    %113 = vperm.xlu0 %112, %v63
    %v114 = vpop.permute.xlu0 %113
    %vm115 = vcmp.eq.s32.totalorder %v114, %v40
    %vm116 = vcmp.eq.s32.totalorder %v114, %v64
    %vm117 = vmor %vm110, %vm115
    %vm118 = vmor %vm111, %vm116
    %119 = vset.pattern.permute.xlu0 8
    %120 = vperm.xlu0 %119, %v63
    %v121 = vpop.permute.xlu0 %120
    %vm122 = vcmp.eq.s32.totalorder %v121, %v40
    %vm123 = vcmp.eq.s32.totalorder %v121, %v64
    %vm124 = vmor %vm117, %vm122
    %vm125 = vmor %vm118, %vm123
    %126 = vset.pattern.permute.xlu0 9
    %127 = vperm.xlu0 %126, %v63
    %v128 = vpop.permute.xlu0 %127
    %vm129 = vcmp.eq.s32.totalorder %v128, %v40
    %vm130 = vcmp.eq.s32.totalorder %v128, %v64
    %vm131 = vmor %vm124, %vm129
    %vm132 = vmor %vm125, %vm130
    %133 = vset.pattern.permute.xlu0 10
    %134 = vperm.xlu0 %133, %v63
    %v135 = vpop.permute.xlu0 %134
    %vm136 = vcmp.eq.s32.totalorder %v135, %v40
    %vm137 = vcmp.eq.s32.totalorder %v135, %v64
    %vm138 = vmor %vm131, %vm136
    %vm139 = vmor %vm132, %vm137
    %140 = vset.pattern.permute.xlu0 11
    %141 = vperm.xlu0 %140, %v63
    %v142 = vpop.permute.xlu0 %141
    %vm143 = vcmp.eq.s32.totalorder %v142, %v40
    %vm144 = vcmp.eq.s32.totalorder %v142, %v64
    %vm145 = vmor %vm138, %vm143
    %vm146 = vmor %vm139, %vm144
    %v147 = vsel %vm145, 1, 0
    %v148 = vsel %vm146, 1, 0
    %v149 = vcvt.s32.f32 %v147
    %v150 = vcvt.s32.f32 %v148
    %v151 = vld [vmem:[#allocation5] sm:$0xff]
    %v152 = vld [vmem:[#allocation5 + $0x8] sm:$0xff]
    %v153 = vld [vmem:[#allocation5 + $0x10] sm:$0xff]
    %v154 = vld [vmem:[#allocation5 + $0x18] sm:$0xff]
    %v155 = vld [vmem:[#allocation5 + $0x20] sm:$0xff]
    %v156 = vld [vmem:[#allocation5 + $0x28] sm:$0xff]
    %v157 = vld [vmem:[#allocation5 + $0x30] sm:$0xff]
    %v158 = vld [vmem:[#allocation5 + $0x38] sm:$0xff]
    %v159 = vld [vmem:[#allocation5 + $0x40] sm:$0xff]
    %v160 = vld [vmem:[#allocation5 + $0x48] sm:$0xff]
    %v161 = vld [vmem:[#allocation5 + $0x50] sm:$0xff]
    %v162 = vld [vmem:[#allocation5 + $0x58] sm:$0xff]
    %v163 = vld [vmem:[#allocation5 + $0x60] sm:$0xff]
    %v164 = vld [vmem:[#allocation5 + $0x68] sm:$0xff]
    %v165 = vld [vmem:[#allocation5 + $0x70] sm:$0xff]
    %v166 = vld [vmem:[#allocation5 + $0x78] sm:$0xff]
    %v167 = vld [vmem:[#allocation5 + $0x80] sm:$0xff]
    %v168 = vld [vmem:[#allocation5 + $0x88] sm:$0xff]
    %v169 = vld [vmem:[#allocation5 + $0x90] sm:$0xff]
    %v170 = vld [vmem:[#allocation5 + $0x98] sm:$0xff]
    %v171 = vld [vmem:[#allocation5 + $0xa0] sm:$0xff]
    %v172 = vld [vmem:[#allocation5 + $0xa8] sm:$0xff]
    %v173 = vld [vmem:[#allocation5 + $0xb0] sm:$0xff]
    %v174 = vld [vmem:[#allocation5 + $0xb8] sm:$0xff]
    %v175 = vld [vmem:[#allocation5 + $0xc0] sm:$0xff]
    %v176 = vld [vmem:[#allocation5 + $0xc8] sm:$0xff]
    %vm177 = vcmask 654336
    %v179 = vsel %vm177, %v150, 0
    %181 = vmatprep.subr.mxu0 0.0
    %182 = vmatpush1.msra.mxu0 %v166
    %183 = vmatprep.subr.mxu0 0.0
    %184 = vmatpush1.msra.mxu0 %v165
    %185 = vmatprep.subr.mxu0 0.0
    %186 = vmatpush1.msra.mxu0 %v164
    %187 = vmatprep.subr.mxu0 0.0
    %188 = vmatpush1.msra.mxu0 %v163
    %189 = vmatprep.subr.mxu0 0.0
    %190 = vmatpush1.msra.mxu0 %v162
    %191 = vmatprep.subr.mxu0 0.0
    %192 = vmatpush1.msra.mxu0 %v161
    %193 = vmatprep.subr.mxu0 0.0
    %194 = vmatpush1.msra.mxu0 %v160
    %195 = vmatprep.subr.mxu0 0.0
    %196 = vmatpush1.msra.mxu0 %v159
    %197 = vmatprep.subr.mxu0 0.0
    %198 = vmatpush1.msra.mxu0 %v158
    %199 = vmatprep.subr.mxu0 0.0
    %200 = vmatpush1.msra.mxu0 %v157
    %201 = vmatprep.subr.mxu0 0.0
    %202 = vmatpush1.msra.mxu0 %v156
    %203 = vmatprep.subr.mxu0 0.0
    %204 = vmatpush1.msra.mxu0 %v155
    %205 = vmatprep.subr.mxu0 0.0
    %206 = vmatpush1.msra.mxu0 %v154
    %207 = vmatprep.subr.mxu0 0.0
    %208 = vmatpush1.msra.mxu0 %v153
    %209 = vmatprep.subr.mxu0 0.0
    %210 = vmatpush1.msra.mxu0 %v152
    %211 = vmatprep.subr.mxu0 0.0
    %212 = vmatpush1.msra.mxu0 %v151
    %213 = vmatprep.subr.mxu0 0.0
    %214 = vmatpush2.msra.mxu0 0.0
    %215 = vmatprep.subr.mxu0 0.0
    %216 = vmatpush2.msra.mxu0 0.0
    %217 = vmatprep.subr.mxu0 0.0
    %218 = vmatpush2.msra.mxu0 0.0
    %219 = vmatprep.subr.mxu0 0.0
    %220 = vmatpush2.msra.mxu0 0.0
    %221 = vmatprep.subr.mxu0 0.0
    %222 = vmatpush2.msra.mxu0 0.0
    %223 = vmatprep.subr.mxu0 0.0
    %224 = vmatpush2.msra.mxu0 0.0
    %225 = vmatprep.subr.mxu0 0.0
    %226 = vmatpush2.msra.mxu0 %v176
    %227 = vmatprep.subr.mxu0 0.0
    %228 = vmatpush2.msra.mxu0 %v175
    %229 = vmatprep.subr.mxu0 0.0
    %230 = vmatpush2.msra.mxu0 %v174
    %231 = vmatprep.subr.mxu0 0.0
    %232 = vmatpush2.msra.mxu0 %v173
    %233 = vmatprep.subr.mxu0 0.0
    %234 = vmatpush2.msra.mxu0 %v172
    %235 = vmatprep.subr.mxu0 0.0
    %236 = vmatpush2.msra.mxu0 %v171
    %237 = vmatprep.subr.mxu0 0.0
    %238 = vmatpush2.msra.mxu0 %v170
    %239 = vmatprep.subr.mxu0 0.0
    %240 = vmatpush2.msra.mxu0 %v169
    %241 = vmatprep.subr.mxu0 0.0
    %242 = vmatpush2.msra.mxu0 %v168
    %243 = vmatprep.subr.mxu0 0.0
    %244 = vmatpush2.msra.mxu0 %v167
    %245 = vmatprep.mubr.f32.mxu0 %v179
    %246 = vmatmul.mubr.f32.gmra.mxu0 %v149
    %v247 = vpop.f32.mrf.mxu0
    %v248 = vadd.f32 0.0, %v247
    %v249 = vpop.f32.mrf.mxu0
    %250 = vdwg.mxu0
    %251 = vst [vmem:[#allocation7] sm:$0xff] %v248
    // Predicated region
    $region18: #{tpu_custom_call.1} parent=1 // pred_check
      _
    $region19: #{tpu_custom_call.1} parent=1 // pred_check_branch
      %253 = sbr.rel (0) target = $region21
    $region20: #{tpu_custom_call.1} parent=1 // pred_region
      %s255 = ssub.s32 128, 128
      %256 = vsyncadd [#allocation4], %s255
      %s258 = sshll.u32 [#allocation7], 4
      %s259 = int_to_ptr.vmem [resolvable:$true] %s258
      %261 = dma.vmem_to_hbm [thread:$0]  %s259, 128, %s2, [#allocation4]
    $region21: #{tpu_custom_call.1} parent=1 // pred_fallthru
      _
    // Predicated region
    $region22: #{tpu_custom_call.1} parent=1 // pred_check
      _
    $region23: #{tpu_custom_call.1} parent=1 // pred_check_branch
      %263 = sbr.rel (0) target = $region25
    $region24: #{tpu_custom_call.1} parent=1 // pred_region
      %264 = dma.done [#allocation4], 128
    $region25: #{tpu_custom_call.1} parent=1 // pred_fallthru
      _
    %265 = vsyncpa [#allocation3], 1
    %266 = vsyncpa [#allocation6], 1
    %267 = vsyncpa [#allocation4], 1

</llo_original>
